<compile_context>
chip_gen: v6e
topology: v6e:2x2x1
jax: 0.10.0
libtpu: 0.0.40
codegen_flags: <defaults>
</compile_context>

<pallas_src>
import functools

import jax
import jax.numpy as jnp
from jax.experimental import pallas as pl
from jax.experimental.pallas import tpu as pltpu


def simple_cnn_kernel(x_ref, wconv_ref, consts_ref, out_ref, *, num_filters, l_out, out_dim):
    # x:      (B, C_in*L)       bf16
    # wconv:  (C_in*L, L_pad*F) bf16   (Toeplitz-expanded Conv1d weight, columns = t*F + f)
    # consts: (2+O, max(F,O))   f32    row 0: conv bias | rows 1..O: fc weight | row 1+O: fc bias
    # out:    (B, O)            f32
    F = num_filters

    # Conv1d for every output timestep as one aligned bf16 MXU matmul, f32 accumulate.
    conv = jnp.dot(x_ref[...], wconv_ref[...], preferred_element_type=jnp.float32)  # (B, L_pad*F)

    # torch.max(out, dim=2)[0]: temporal max as an unrolled fold over static, contiguous
    # F-wide lane slices (one per real timestep). Padded (zero) columns are never touched.
    pooled = conv[:, 0:F]
    for t in range(1, l_out):
        pooled = jnp.maximum(pooled, conv[:, t * F:(t + 1) * F])                     # (B, F)

    # Conv bias + ReLU hoisted after the max (bias constant over t, ReLU monotone).
    pooled = jnp.maximum(pooled + consts_ref[0:1, :F], 0.0)                          # (B, F) f32

    # Linear (F -> O) in f32 on the VPU/XLU (matvec for the module default O=1): avoids a
    # second dependent MXU round-trip and keeps the pooled activations un-rounded.
    wfc = consts_ref[1:1 + out_dim, :F]                                              # (O, F)
    bfc = consts_ref[1 + out_dim:2 + out_dim, 0:out_dim]                             # (1, O)
    if out_dim == 1:
        logits = jnp.sum(pooled * wfc, axis=-1, keepdims=True) + bfc                 # (B, 1)
    else:  # larger heads: fall back to the MXU
        logits = jax.lax.dot_general(pooled, wfc, (((1,), (1,)), ((), ())),
                                     preferred_element_type=jnp.float32) + bfc       # (B, O)

    # Sigmoid: exp and approx reciprocal both run on the EUP slot (nearly free).
    # Output (B, O) = (2, 1) is lane-sparse but only 8 bytes; keep O a multiple of 128 if it grows.
    out_ref[...] = pl.reciprocal(1.0 + jnp.exp(-logits), approx=True).astype(out_ref.dtype)


@jax.jit
def simple_cnn_forward(x, conv_w, conv_b, fc_w, fc_b):
    """x: (B, C_in, L) f32. conv_w: (F, C_in, K). conv_b: (F,). fc_w: (O, F). fc_b: (O,)."""
    B, C_in, L = x.shape
    F, _, K = conv_w.shape
    O = fc_w.shape[0]
    L_out = L - K + 1
    L_pad = pl.cdiv(L_out, 8) * 8        # pad time so the matmul N dim (L_pad*F = 128) is lane dense

    # Activations: one flat bf16 tile — no im2col duplication through HBM.
    x2 = x.reshape(B, C_in * L).astype(jnp.bfloat16)                                 # (B, C_in*L)

    # Toeplitz-expand the conv weight so Conv1d over all timesteps is a single matmul:
    #   W2[c*L + l, t*F + f] = conv_w[f, c, l - t]   if 0 <= l - t < K and t < L_out, else 0.
    l_idx = jnp.arange(L)[:, None]                                                   # (L, 1)
    t_idx = jnp.arange(L_pad)[None, :]                                               # (1, L_pad)
    k_idx = l_idx - t_idx                                                            # (L, L_pad)
    valid = (k_idx >= 0) & (k_idx < K) & (t_idx < L_out)
    w_g = conv_w[:, :, jnp.clip(k_idx, 0, K - 1)]                                    # (F, C_in, L, L_pad)
    w_g = jnp.where(valid[None, None], w_g, 0.0)
    wconv2 = w_g.transpose(1, 2, 3, 0).reshape(C_in * L, L_pad * F).astype(jnp.bfloat16)

    # Pack the small f32 constants into one array: 3 kernel inputs total (3 DMAs, not 5).
    cw = max(F, O)
    consts = jnp.zeros((2 + O, cw), jnp.float32)
    consts = consts.at[0, :F].set(conv_b.astype(jnp.float32))
    consts = consts.at[1:1 + O, :F].set(fc_w.astype(jnp.float32))
    consts = consts.at[1 + O, :O].set(fc_b.astype(jnp.float32))

    flops = 2 * B * (C_in * L) * (L_pad * F) + 2 * B * F * O
    bytes_accessed = (x2.size * 2 + wconv2.size * 2 + consts.size * 4 + B * O * 4)

    kernel = functools.partial(simple_cnn_kernel, num_filters=F, l_out=L_out, out_dim=O)
    vmem = pl.BlockSpec(memory_space=pltpu.MemorySpace.VMEM)
    return pl.pallas_call(
        kernel,
        out_shape=jax.ShapeDtypeStruct((B, O), jnp.float32),
        in_specs=[vmem, vmem, vmem],
        out_specs=vmem,
        cost_estimate=pl.CostEstimate(flops=flops, transcendentals=B * O,
                                      bytes_accessed=bytes_accessed),
    )(x2, wconv2, consts)


def _reference_forward(x, conv_w, conv_b, fc_w, fc_b):
    """Pure-JAX f32 reference matching the PyTorch module."""
    B, C_in, L = x.shape
    F, _, K = conv_w.shape
    L_out = L - K + 1
    patches = jnp.stack([x[:, :, t:t + K] for t in range(L_out)], axis=1)            # (B, L_out, C_in, K)
    conv = jnp.einsum("blck,fck->blf", patches, conv_w) + conv_b[None, None, :]
    conv = jnp.maximum(conv, 0.0)
    pooled = jnp.max(conv, axis=1)
    logits = pooled @ fc_w.T + fc_b
    return jax.nn.sigmoid(logits)


if __name__ == "__main__":
    # Shapes consistent with the module: Conv1d(input_dim=4, 16, kernel_size=10), Linear(16, 1)
    B, C_in, L = 2, 4, 16
    F, K, O = 16, 10, 1

    key = jax.random.PRNGKey(0)
    kx, kw1, kb1, kw2, kb2 = jax.random.split(key, 5)

    x = jax.random.normal(kx, (B, C_in, L), dtype=jnp.float32)

    # Deterministic parameter init (PyTorch-style uniform bounds).
    fan_in_conv = C_in * K
    bound1 = 1.0 / jnp.sqrt(fan_in_conv)
    conv_w = jax.random.uniform(kw1, (F, C_in, K), minval=-bound1, maxval=bound1, dtype=jnp.float32)
    conv_b = jax.random.uniform(kb1, (F,), minval=-bound1, maxval=bound1, dtype=jnp.float32)

    bound2 = 1.0 / jnp.sqrt(F)
    fc_w = jax.random.uniform(kw2, (O, F), minval=-bound2, maxval=bound2, dtype=jnp.float32)
    fc_b = jax.random.uniform(kb2, (O,), minval=-bound2, maxval=bound2, dtype=jnp.float32)

    out = jax.block_until_ready(simple_cnn_forward(x, conv_w, conv_b, fc_w, fc_b))
    ref = _reference_forward(x, conv_w, conv_b, fc_w, fc_b)

    assert out.shape == (B, O)
    # bf16 MXU operands + approx reciprocal vs the pure-f32 reference; FC now runs in f32,
    # so this tolerance is conservative.
    assert jnp.allclose(out, ref, atol=2e-2, rtol=0.0), (out, ref)

    print("KERNEL_OK")
</pallas_src>

<mosaic_0001>
module attributes {stable_mosaic.version = 11 : i64} {
  func.func @simple_cnn_kernel(%arg0: memref<2x64xbf16, #tpu.memory_space<vmem>>, %arg1: memref<64x128xbf16, #tpu.memory_space<vmem>>, %arg2: memref<3x16xf32, #tpu.memory_space<vmem>>, %arg3: memref<2x1xf32, #tpu.memory_space<vmem>>) attributes {dimension_semantics = [], scalar_prefetch = 0 : i64, scratch_operands = 0 : i64, tpu.core_type = #tpu.core_type<tc>} {
    %c0 = arith.constant 0 : index
    %c0_0 = arith.constant 0 : index
    %0 = vector.load %arg0[%c0, %c0_0] : memref<2x64xbf16, #tpu.memory_space<vmem>>, vector<2x64xbf16>
    %c0_1 = arith.constant 0 : index
    %c0_2 = arith.constant 0 : index
    %1 = vector.load %arg1[%c0_1, %c0_2] : memref<64x128xbf16, #tpu.memory_space<vmem>>, vector<64x128xbf16>
    %cst = arith.constant dense<0.000000e+00> : vector<2x128xf32>
    %2 = tpu.matmul %0, %1, %cst {dimension_numbers = #tpu.dot_dimension_numbers<[1], [0], [0], [1], [0, 0, 1, 1], [], []>} : vector<2x64xbf16>, vector<64x128xbf16>, vector<2x128xf32> -> vector<2x128xf32>
    %3 = vector.extract_strided_slice %2 {offsets = [0, 0], sizes = [2, 16], strides = [1, 1]} : vector<2x128xf32> to vector<2x16xf32>
    %4 = vector.extract_strided_slice %2 {offsets = [0, 16], sizes = [2, 16], strides = [1, 1]} : vector<2x128xf32> to vector<2x16xf32>
    %5 = arith.maximumf %3, %4 : vector<2x16xf32>
    %6 = vector.extract_strided_slice %2 {offsets = [0, 32], sizes = [2, 16], strides = [1, 1]} : vector<2x128xf32> to vector<2x16xf32>
    %7 = arith.maximumf %5, %6 : vector<2x16xf32>
    %8 = vector.extract_strided_slice %2 {offsets = [0, 48], sizes = [2, 16], strides = [1, 1]} : vector<2x128xf32> to vector<2x16xf32>
    %9 = arith.maximumf %7, %8 : vector<2x16xf32>
    %10 = vector.extract_strided_slice %2 {offsets = [0, 64], sizes = [2, 16], strides = [1, 1]} : vector<2x128xf32> to vector<2x16xf32>
    %11 = arith.maximumf %9, %10 : vector<2x16xf32>
    %12 = vector.extract_strided_slice %2 {offsets = [0, 80], sizes = [2, 16], strides = [1, 1]} : vector<2x128xf32> to vector<2x16xf32>
    %13 = arith.maximumf %11, %12 : vector<2x16xf32>
    %14 = vector.extract_strided_slice %2 {offsets = [0, 96], sizes = [2, 16], strides = [1, 1]} : vector<2x128xf32> to vector<2x16xf32>
    %15 = arith.maximumf %13, %14 : vector<2x16xf32>
    %c0_3 = arith.constant 0 : index
    %c0_4 = arith.constant 0 : index
    %16 = vector.load %arg2[%c0_3, %c0_4] : memref<3x16xf32, #tpu.memory_space<vmem>>, vector<1x16xf32>
    %17 = vector.broadcast %16 : vector<1x16xf32> to vector<2x16xf32>
    %18 = arith.addf %15, %17 : vector<2x16xf32>
    %cst_5 = arith.constant 0.000000e+00 : f32
    %19 = vector.broadcast %cst_5 : f32 to vector<2x16xf32>
    %20 = arith.maximumf %18, %19 : vector<2x16xf32>
    %c1 = arith.constant 1 : index
    %c0_6 = arith.constant 0 : index
    %21 = vector.load %arg2[%c1, %c0_6] : memref<3x16xf32, #tpu.memory_space<vmem>>, vector<1x16xf32>
    %c2 = arith.constant 2 : index
    %c0_7 = arith.constant 0 : index
    %22 = vector.load %arg2[%c2, %c0_7] : memref<3x16xf32, #tpu.memory_space<vmem>>, vector<1x1xf32>
    %23 = vector.broadcast %21 : vector<1x16xf32> to vector<2x16xf32>
    %24 = arith.mulf %20, %23 : vector<2x16xf32>
    %cst_8 = arith.constant dense<0.000000e+00> : vector<2xf32>
    %25 = vector.multi_reduction <add>, %24, %cst_8 [1] : vector<2x16xf32> to vector<2xf32>
    %26 = vector.shape_cast %25 : vector<2xf32> to vector<2x1xf32>
    %27 = vector.broadcast %22 : vector<1x1xf32> to vector<2x1xf32>
    %28 = arith.addf %26, %27 : vector<2x1xf32>
    %cst_9 = arith.constant 0.000000e+00 : f32
    %29 = vector.broadcast %cst_9 : f32 to vector<2x1xf32>
    %30 = arith.subf %29, %28 : vector<2x1xf32>
    %31 = math.exp %30 : vector<2x1xf32>
    %cst_10 = arith.constant 1.000000e+00 : f32
    %32 = vector.broadcast %cst_10 : f32 to vector<2x1xf32>
    %33 = arith.addf %32, %31 : vector<2x1xf32>
    %34 = tpu.reciprocal %33 {approx = true} : vector<2x1xf32> -> vector<2x1xf32>
    %c0_11 = arith.constant 0 : index
    %c0_12 = arith.constant 0 : index
    %35 = vector.load %arg3[%c0_11, %c0_12] : memref<2x1xf32, #tpu.memory_space<vmem>>, vector<2x1xf32>
    tpu.vector_store %arg3[%c0_11, %c0_12], %34 {strides = array<i32>} : memref<2x1xf32, #tpu.memory_space<vmem>>, vector<2x1xf32>,
    return
  }
}

</mosaic_0001>

<llo_original>
// kernel: simple_cnn_forward.1
$region0: #{simple_cnn_forward.1}
  #allocation0 [shape = 'u32[]', space=smem, size = 0x4, offset = 0x4, fixed_abs, tag = 'smem constant byte address 0x4 - core index']
  #allocation1 [shape = 'u32[144,128]{1,0:T(1,128)}', space=vmem, size = 0x12000, scoped, tag = 'internal scratch']
  %s0 = inlined_call_operand.vmem [shape: bf16[2,64], index: 0, kind: input, shape index: {}]
  %s1 = inlined_call_operand.vmem [shape: bf16[64,128], index: 1, kind: input, shape index: {}]
  %s2 = inlined_call_operand.vmem [shape: f32[3,16], index: 2, kind: input, shape index: {}]
  %s3 = inlined_call_operand.vmem [shape: f32[2,1], index: 3, kind: output, shape index: {}]
  %s4 = sld [smem:[#allocation0]]
  $region22: #{simple_cnn_forward.1} parent=0
    _
  %s6 = ssub.s32 1, %s4
  %s7 = scalar_select 0, %s6, %s4
  // Predicated region
  $region2: #{simple_cnn_forward.1} parent=0 // pred_check
    _
  $region3: #{simple_cnn_forward.1} parent=0 // pred_check_branch
    %9 = sbr.rel (0) target = $region5
  $region4: #{simple_cnn_forward.1} parent=0 // pred_region
    _
  $region5: #{simple_cnn_forward.1} parent=0 // pred_fallthru
    _
  // Predicated region
  $region6: #{simple_cnn_forward.1} parent=0 // pred_check
    _
  $region7: #{simple_cnn_forward.1} parent=0 // pred_check_branch
    %11 = sbr.rel (0) target = $region9
  $region8: #{simple_cnn_forward.1} parent=0 // pred_region
    _
  $region9: #{simple_cnn_forward.1} parent=0 // pred_fallthru
    _
  // Predicated region
  $region10: #{simple_cnn_forward.1} parent=0 // pred_check
    _
  $region11: #{simple_cnn_forward.1} parent=0 // pred_check_branch
    %13 = sbr.rel (0) target = $region13
  $region12: #{simple_cnn_forward.1} parent=0 // pred_region
    _
  $region13: #{simple_cnn_forward.1} parent=0 // pred_fallthru
    _
  %v15 = vld [vmem:[%s0] sm:$0x1]
  %v16 = vld [vmem:[%s1] sm:$0xf]
  %v17 = vld [vmem:[%s1 + $0x4] sm:$0xf]
  %v18 = vld [vmem:[%s1 + $0x8] sm:$0xf]
  %v19 = vld [vmem:[%s1 + $0xc] sm:$0xf]
  %v20 = vld [vmem:[%s1 + $0x10] sm:$0xf]
  %v21 = vld [vmem:[%s1 + $0x14] sm:$0xf]
  %v22 = vld [vmem:[%s1 + $0x18] sm:$0xf]
  %v23 = vld [vmem:[%s1 + $0x1c] sm:$0xf]
  %v32 = vunpack.c.l.b16 %v16
  %v33 = vunpack.c.l.b16 %v17
  %v34 = vunpack.c.l.b16 %v18
  %v35 = vunpack.c.l.b16 %v19
  %v36 = vunpack.c.l.b16 %v20
  %v37 = vunpack.c.l.b16 %v21
  %v38 = vunpack.c.l.b16 %v22
  %v39 = vunpack.c.l.b16 %v23
  %v40 = vpack.c.b16 %v33, %v32
  %v41 = vpack.c.b16 %v35, %v34
  %v42 = vpack.c.b16 %v37, %v36
  %v43 = vpack.c.b16 %v39, %v38
  %vm48 = vcmask 523264
  %v50 = vsel %vm48, %v15, 0
  %52 = vmatprep.subr.bf16.mxu0 0
  %53 = vmatpush1.bf16.msra.mxu0 0
  %54 = vmatprep.subr.bf16.mxu0 0
  %55 = vmatpush1.bf16.msra.mxu0 0
  %56 = vmatprep.subr.bf16.mxu0 0
  %57 = vmatpush1.bf16.msra.mxu0 0
  %58 = vmatprep.subr.bf16.mxu0 0
  %59 = vmatpush1.bf16.msra.mxu0 0
  %60 = vmatprep.subr.bf16.mxu0 0
  %61 = vmatpush1.bf16.msra.mxu0 %v43
  %62 = vmatprep.subr.bf16.mxu0 0
  %63 = vmatpush1.bf16.msra.mxu0 %v42
  %64 = vmatprep.subr.bf16.mxu0 0
  %65 = vmatpush1.bf16.msra.mxu0 %v41
  %66 = vmatprep.subr.bf16.mxu0 0
  %67 = vmatpush1.bf16.msra.mxu0 %v40
  %68 = vmatprep.subr.bf16.mxu0 0
  %69 = vmatpush2.bf16.msra.mxu0 0
  %70 = vmatprep.subr.bf16.mxu0 0
  %71 = vmatpush2.bf16.msra.mxu0 0
  %72 = vmatprep.subr.bf16.mxu0 0
  %73 = vmatpush2.bf16.msra.mxu0 0
  %74 = vmatprep.subr.bf16.mxu0 0
  %75 = vmatpush2.bf16.msra.mxu0 0
  %76 = vmatprep.subr.bf16.mxu0 0
  %77 = vmatpush2.bf16.msra.mxu0 0
  %78 = vmatprep.subr.bf16.mxu0 0
  %79 = vmatpush2.bf16.msra.mxu0 0
  %80 = vmatprep.subr.bf16.mxu0 0
  %81 = vmatpush2.bf16.msra.mxu0 0
  %82 = vmatprep.subr.bf16.mxu0 0
  %83 = vmatpush2.bf16.msra.mxu0 0
  %84 = vmatprep.mubr.bf16.mxu0 0
  %85 = vmatmul.mubr.bf16.gmra.mxu0 %v50
  %v86 = vpop.f32.mrf.mxu0
  %v87 = vadd.f32 0.0, %v86
  %v88 = vpop.f32.mrf.mxu0
  %v89 = vpop.f32.mrf.mxu0
  %v90 = vpop.f32.mrf.mxu0
  %91 = vdwg.mxu0
  %93 = vrot.lane.b32.xlu0 %v87, 112
  %v94 = vpop.permute.xlu0 %93
  %v96 = vmax.f32 %v87, %v94
  %97 = vrot.lane.b32.xlu0 %v87, 96
  %v98 = vpop.permute.xlu0 %97
  %v100 = vmax.f32 %v96, %v98
  %101 = vrot.lane.b32.xlu0 %v87, 80
  %v102 = vpop.permute.xlu0 %101
  %v104 = vmax.f32 %v100, %v102
  %105 = vrot.lane.b32.xlu0 %v87, 64
  %v106 = vpop.permute.xlu0 %105
  %v108 = vmax.f32 %v104, %v106
  %109 = vrot.lane.b32.xlu0 %v87, 48
  %v110 = vpop.permute.xlu0 %109
  %v112 = vmax.f32 %v108, %v110
  %113 = vrot.lane.b32.xlu0 %v87, 32
  %v114 = vpop.permute.xlu0 %113
  %v116 = vmax.f32 %v112, %v114
  %v117 = vld [vmem:[%s2] sm:$0x1]
  %v118 = vlaneseq
  %v119 = vshrl.u32 %v118, 7
  %v120 = vsub.s32 0, %v119
  %v121 = vrot.slane %v117, %v120
  %v122 = vadd.f32 %v116, %v121
  %v123 = vmax.f32 %v122, 0.0
  %v124 = vld [vmem:[%s2 + $0x1] sm:$0x1]
  %v125 = vld [vmem:[%s2 + $0x2] sm:$0x1]
  %v126 = vlaneseq
  %v127 = vshrl.u32 %v126, 7
  %v128 = vsub.s32 0, %v127
  %v129 = vrot.slane %v124, %v128
  %v130 = vmul.f32 %v123, %v129
  %vm131 = vcmask 123904
  %v132 = vsel %vm131, %v130, 0.0
  %133 = vadd.xlane.f32.xlu0 %v132
  %v134 = vpop.xlane.xlu0 %133
  %v135 = vlaneseq
  %v136 = vshrl.u32 %v135, 7
  %v137 = vsub.s32 0, %v136
  %v138 = vrot.slane %v125, %v137
  %v139 = vadd.f32 %v134, %v138
  %v140 = vsub.f32 0.0, %v139
  %v141 = vmul.f32 %v140, 1.442695
  %v142 = vpow.pop %v141
  %v143 = vadd.f32 %v142, 1.0
  %v144 = vrcp.pop %v143
  %vm145 = vcmask 1024
  %146 = vst.msk [vmem:[%s3] sm:$0x3] %vm145, %v144
  // Predicated region
  $region14: #{simple_cnn_forward.1} parent=0 // pred_check
    _
  $region15: #{simple_cnn_forward.1} parent=0 // pred_check_branch
    %148 = sbr.rel (0) target = $region17
  $region16: #{simple_cnn_forward.1} parent=0 // pred_region
    _
  $region17: #{simple_cnn_forward.1} parent=0 // pred_fallthru
    _
  // Predicated region
  $region18: #{simple_cnn_forward.1} parent=0 // pred_check
    _
  $region19: #{simple_cnn_forward.1} parent=0 // pred_check_branch
    %150 = sbr.rel (0) target = $region21
  $region20: #{simple_cnn_forward.1} parent=0 // pred_region
    _
  $region21: #{simple_cnn_forward.1} parent=0 // pred_fallthru
    _

</llo_original>
